<compile_context>
chip_gen: v6e
topology: v6e:2x2x1
jax: 0.10.0
libtpu: 0.0.40
codegen_flags: <defaults>
</compile_context>

<pallas_src>
import math
import functools

import jax
import jax.numpy as jnp
from jax import lax
from jax.experimental import pallas as pl
from jax.experimental.pallas import tpu as pltpu


_SQRT_2_OVER_PI = math.sqrt(2.0 / math.pi)


def _gelu(x):
    # matches the reference `gelu` (tanh approximation)
    return 0.5 * x * (1.0 + jnp.tanh(_SQRT_2_OVER_PI * (x + 0.044715 * x * x * x)))


def _layernorm(x, gamma, beta, eps=1e-5):
    mean = jnp.mean(x, axis=-1, keepdims=True)
    var = jnp.mean((x - mean) ** 2, axis=-1, keepdims=True)
    return (x - mean) * lax.rsqrt(var + eps) * gamma + beta


# --------------------------------------------------------------------------------------
# Pass 1: K/V projection (computed once over the full sequence, stored in mxu_dtype)
# --------------------------------------------------------------------------------------
def kv_proj_kernel(x_ref, wkv_ref, bkv_ref, kv_ref, *, mxu_dtype):
    x = x_ref[0].astype(mxu_dtype)                                    # (ts, D)
    kv = jnp.dot(x, wkv_ref[...], preferred_element_type=jnp.float32) # (ts, 2D) f32 acc
    kv = kv + bkv_ref[...]
    kv_ref[0] = kv.astype(kv_ref.dtype)


# --------------------------------------------------------------------------------------
# Pass 2: decoder block (Q projection + flash-style causal attention + out proj + LN +
#         position-wise FF + LN) for one (batch, query-tile) grid point.
# --------------------------------------------------------------------------------------
def decoder_block_kernel(x_ref, kv_ref, wq_ref, bq_ref, wo_ref, bo_ref,
                         g1_ref, be1_ref, w1_ref, bf1_ref, w2_ref, bf2_ref,
                         g2_ref, be2_ref, o_ref,
                         *, n_heads, word_dim, tq, mxu_dtype):
    D = word_dim
    H = n_heads
    hd = D // H
    scale = 1.0 / math.sqrt(hd)
    NEG_INF = jnp.float32(-1e9)

    qi = pl.program_id(1)
    q_start = qi * tq

    def mm(a, b):
        # MXU matmul: cast activations to mxu_dtype (weights already are), f32 accumulate.
        return jnp.dot(a.astype(mxu_dtype), b, preferred_element_type=jnp.float32)

    x_q = x_ref[0].astype(jnp.float32)                                 # (tq, D)

    # ---- Q projection for this tile (pre-scaled by 1/sqrt(hd)) ----
    q = (mm(x_q, wq_ref[...]) + bq_ref[...]) * scale                   # (tq, D) f32
    q_mx = q.astype(mxu_dtype)

    # ---- flash-style attention over KV tiles (tk == tq), causal skip ----
    rows = lax.broadcasted_iota(jnp.int32, (tq, tq), 0)
    cols = lax.broadcasted_iota(jnp.int32, (tq, tq), 1)
    diag_mask = cols <= rows                                           # diagonal tile only

    def attend_tile(kv_start, carry, masked):
        m_p, l_p, a_p = carry                                          # per-head tuples
        kv_t = kv_ref[0, pl.ds(kv_start, tq), :]                       # (tq, 2D) mxu_dtype
        m_n, l_n, a_n = [], [], []
        for h in range(H):                                             # lane slices, no stack/concat
            lo, hi = h * hd, (h + 1) * hd
            k_h = kv_t[:, lo:hi]                                       # (tk, hd)
            v_h = kv_t[:, D + lo:D + hi]                               # (tk, hd)
            s = lax.dot_general(q_mx[:, lo:hi], k_h,
                                (((1,), (1,)), ((), ())),
                                preferred_element_type=jnp.float32)    # (tq, tk)
            if masked:
                s = jnp.where(diag_mask, s, NEG_INF)
            m_new = jnp.maximum(m_p[h], jnp.max(s, axis=-1, keepdims=True))
            alpha = jnp.exp(m_p[h] - m_new)
            p = jnp.exp(s - m_new)
            l_new = alpha * l_p[h] + jnp.sum(p, axis=-1, keepdims=True)
            acc_new = alpha * a_p[h] + jnp.dot(p.astype(mxu_dtype), v_h,
                                               preferred_element_type=jnp.float32)
            m_n.append(m_new)
            l_n.append(l_new)
            a_n.append(acc_new)
        return tuple(m_n), tuple(l_n), tuple(a_n)

    init = (tuple(jnp.full((tq, 1), -jnp.inf, jnp.float32) for _ in range(H)),
            tuple(jnp.zeros((tq, 1), jnp.float32) for _ in range(H)),
            tuple(jnp.zeros((tq, hd), jnp.float32) for _ in range(H)))

    # tiles strictly below the diagonal need no mask; masked tiles are skipped entirely
    def body(i, carry):
        return attend_tile(pl.multiple_of(i * tq, tq), carry, masked=False)

    carry = lax.fori_loop(0, qi, body, init)
    # diagonal tile: apply the causal mask
    _, l_f, a_f = attend_tile(pl.multiple_of(q_start, tq), carry, masked=True)

    ctx = jnp.concatenate(
        [a_f[h] * pl.reciprocal(l_f[h], approx=True) for h in range(H)], axis=-1)

    attn = mm(ctx, wo_ref[...]) + bo_ref[...]
    # attn_dropout / output_dropout are identity in eval mode
    norm1 = _layernorm(attn + x_q, g1_ref[...], be1_ref[...])

    # ---- position-wise feed-forward ----
    hidden = _gelu(mm(norm1, w1_ref[...]) + bf1_ref[...])
    ff = mm(hidden, w2_ref[...]) + bf2_ref[...]
    # ff dropout is identity in eval mode

    out = _layernorm(ff + norm1, g2_ref[...], be2_ref[...])
    o_ref[0] = out.astype(o_ref.dtype)


# --------------------------------------------------------------------------------------
# Wrapper
# --------------------------------------------------------------------------------------
def _vmem_capacity_bytes():
    try:
        return int(pltpu.get_tpu_info().vmem_capacity_bytes)
    except Exception:
        return 128 * 1024 * 1024   # v5e / v6e physical VMEM


def _choose_tq(S, D, H, w_bytes, budget):
    """Pick the largest query/KV tile that (heuristically) fits the VMEM budget."""
    cands = [t for t in (512, 256, 128) if S % t == 0]
    if not cands:
        return S                       # S < 128 or not tileable: single tile
    weight_bytes = 10 * D * D * w_bytes            # wq + wkv + wo + w1 + w2 (single-buffered)
    kv_bytes = 2 * S * 2 * D * w_bytes             # full-seq KV, double-buffered
    for t in cands:
        x_io = 2 * 2 * t * D * 4                   # x tile + out tile, double-buffered, f32
        scores = H * t * t * 4                     # live score tile(s)
        acts = (3 * t * D + t * 3 * D) * 4         # q/ctx/norm1 + ff hidden
        if weight_bytes + kv_bytes + x_io + scores + acts <= budget:
            return t
    return cands[-1]


def decoder_block(x, params, n_heads, mxu_dtype=jnp.bfloat16):
    """x: (B, S, D). params: tuple from build_params (linear weights stored as
    (in, out) = torch_weight.T). MXU operands default to bf16 (f32 accumulation);
    pass mxu_dtype=jnp.float32 for strict f32 parity with the reference."""
    (wqkv, bqkv, wo, bo, g1, be1, w1, bf1, w2, bf2, g2, be2) = params
    B, S, D = x.shape
    assert D % n_heads == 0, "word_dim must be divisible by n_heads"

    w_bytes = jnp.dtype(mxu_dtype).itemsize
    vmem_cap = _vmem_capacity_bytes()
    vmem_limit = int(vmem_cap * 0.7)        # ~45 MiB on v7x (64 MiB VMEM), ~90 MiB on v5e/v6e
    tq = _choose_tq(S, D, n_heads, w_bytes, vmem_limit)
    nq = S // tq

    # Host-side layout plumbing: split fused qkv, pre-cast matmul weights to mxu_dtype.
    wq = wqkv[:, :D].astype(mxu_dtype)
    bq = bqkv[:, :D]
    wkv = wqkv[:, D:].astype(mxu_dtype)
    bkv = bqkv[:, D:]
    wo_c = wo.astype(mxu_dtype)
    w1_c = w1.astype(mxu_dtype)
    w2_c = w2.astype(mxu_dtype)

    def const_spec(shape):
        # Constant block index across the whole grid -> fetched once, kept resident,
        # single-buffered (no point double-buffering a block that never changes).
        n = len(shape)
        return pl.BlockSpec(shape, lambda b, q, _n=n: (0,) * _n,
                            pipeline_mode=pl.Buffered(1))

    # ---- pass 1: KV projection over the full sequence ----
    kv_flops = 4 * B * S * D * D
    kv_bytes_accessed = (x.size * x.dtype.itemsize + B * S * 2 * D * w_bytes
                         + wkv.size * w_bytes + bkv.size * 4)
    kv = pl.pallas_call(
        functools.partial(kv_proj_kernel, mxu_dtype=mxu_dtype),
        out_shape=jax.ShapeDtypeStruct((B, S, 2 * D), mxu_dtype),
        grid=(B, nq),
        in_specs=[pl.BlockSpec((1, tq, D), lambda b, q: (b, q, 0)),
                  const_spec((D, 2 * D)),
                  const_spec((1, 2 * D))],
        out_specs=pl.BlockSpec((1, tq, 2 * D), lambda b, q: (b, q, 0)),
        compiler_params=pltpu.CompilerParams(
            dimension_semantics=("parallel", "parallel"),
            vmem_limit_bytes=vmem_limit),
        cost_estimate=pl.CostEstimate(flops=kv_flops, transcendentals=0,
                                      bytes_accessed=kv_bytes_accessed),
    )(x, wkv, bkv)

    # ---- pass 2: the decoder block ----
    kernel = functools.partial(decoder_block_kernel, n_heads=n_heads,
                               word_dim=D, tq=tq, mxu_dtype=mxu_dtype)

    in_specs = [
        pl.BlockSpec((1, tq, D), lambda b, q: (b, q, 0)),       # x query tile
        pl.BlockSpec((1, S, 2 * D), lambda b, q: (b, 0, 0)),    # kv (resident per batch)
        const_spec((D, D)), const_spec((1, D)),                 # q projection
        const_spec((D, D)), const_spec((1, D)),                 # attn output linear
        const_spec((1, D)), const_spec((1, D)),                 # layerNorm1 gamma/beta
        const_spec((D, 3 * D)), const_spec((1, 3 * D)),         # ff_layer1
        const_spec((3 * D, D)), const_spec((1, D)),             # ff_layer2
        const_spec((1, D)), const_spec((1, D)),                 # layerNorm2 gamma/beta
    ]

    # Attention FLOPs count only the (kept) causal half; KV projection FLOPs are in pass 1.
    attn_flops = B * 2 * S * (S + tq) * D                       # QK^T + PV
    proj_flops = B * 16 * S * D * D                             # q proj + out proj + ff1 + ff2
    transcendentals = B * (n_heads * S * (S + tq) // 2 + S * 3 * D)
    bytes_accessed = (2 * x.size * x.dtype.itemsize
                      + B * S * 2 * D * w_bytes
                      + (wq.size + wo_c.size + w1_c.size + w2_c.size) * w_bytes
                      + (bq.size + bo.size + g1.size + be1.size + bf1.size
                         + bf2.size + g2.size + be2.size) * 4)

    return pl.pallas_call(
        kernel,
        out_shape=jax.ShapeDtypeStruct((B, S, D), x.dtype),
        grid=(B, nq),
        in_specs=in_specs,
        out_specs=pl.BlockSpec((1, tq, D), lambda b, q: (b, q, 0)),
        compiler_params=pltpu.CompilerParams(
            dimension_semantics=("parallel", "parallel"),
            vmem_limit_bytes=vmem_limit),
        cost_estimate=pl.CostEstimate(flops=attn_flops + proj_flops,
                                      transcendentals=transcendentals,
                                      bytes_accessed=bytes_accessed),
    )(x, kv, wq, bq, wo_c, bo, g1, be1, w1_c, bf1, w2_c, bf2, g2, be2)


# --------------------------------------------------------------------------------------
# Synthetic params + pure-JAX reference
# --------------------------------------------------------------------------------------
def build_params(key, word_dim):
    """Deterministic synthetic params mirroring DecoderBlock.__init__ shapes.
    Linear weights are stored as (in, out) = torch_weight.T."""
    D = word_dim
    ks = jax.random.split(key, 6)
    wqkv = jax.random.normal(ks[0], (D, 3 * D), jnp.float32) * 0.02
    bqkv = jnp.zeros((1, 3 * D), jnp.float32)
    wo = jax.random.normal(ks[1], (D, D), jnp.float32) * 0.02
    bo = jnp.zeros((1, D), jnp.float32)
    g1 = jnp.ones((1, D), jnp.float32)
    be1 = jnp.zeros((1, D), jnp.float32)
    w1 = jax.random.normal(ks[2], (D, 3 * D), jnp.float32) * 0.02
    bf1 = jnp.zeros((1, 3 * D), jnp.float32)
    w2 = jax.random.normal(ks[3], (3 * D, D), jnp.float32) * 0.02
    bf2 = jnp.zeros((1, D), jnp.float32)
    g2 = jnp.ones((1, D), jnp.float32)
    be2 = jnp.zeros((1, D), jnp.float32)
    return (wqkv, bqkv, wo, bo, g1, be1, w1, bf1, w2, bf2, g2, be2)


def decoder_block_ref(x, params, n_heads):
    """Pure-JAX f32 reference for correctness checking."""
    (wqkv, bqkv, wo, bo, g1, be1, w1, bf1, w2, bf2, g2, be2) = params
    B, S, D = x.shape
    hd = D // n_heads
    qkv = x @ wqkv + bqkv[0]
    q, k, v = qkv[..., :D], qkv[..., D:2 * D], qkv[..., 2 * D:]

    def split(t):  # (B,S,D) -> (B,H,S,hd)
        return t.reshape(B, S, n_heads, hd).transpose(0, 2, 1, 3)

    q, k, v = split(q), split(k), split(v)
    s = jnp.einsum('bhqd,bhkd->bhqk', q, k) / math.sqrt(hd)
    mask = jnp.tril(jnp.ones((S, S), jnp.float32))[None, None]
    s = s * mask + (-1e9) * (1.0 - mask)
    p = jax.nn.softmax(s, axis=-1)
    ctx = jnp.einsum('bhqk,bhkd->bhqd', p, v).transpose(0, 2, 1, 3).reshape(B, S, D)
    attn = ctx @ wo + bo[0]
    norm1 = _layernorm(attn + x, g1[0], be1[0])
    hidden = _gelu(norm1 @ w1 + bf1[0])
    ff = hidden @ w2 + bf2[0]
    return _layernorm(ff + norm1, g2[0], be2[0])


if __name__ == "__main__":
    B, S, D, H = 2, 8, 32, 4
    key = jax.random.PRNGKey(0)
    kx, kp = jax.random.split(key)
    x = jax.random.normal(kx, (B, S, D), jnp.float32)
    params = build_params(kp, D)

    ref = decoder_block_ref(x, params, n_heads=H)

    # default fast path: bf16 MXU operands / weights, f32 accumulation
    out_bf16 = jax.block_until_ready(decoder_block(x, params, n_heads=H))
    assert out_bf16.shape == (B, S, D)
    assert bool(jnp.all(jnp.isfinite(out_bf16)))
    assert jnp.allclose(out_bf16, ref, atol=1e-1, rtol=1e-1), "bf16 path diverged from reference"

    # strict-parity path: f32 operands everywhere
    out_f32 = jax.block_until_ready(
        decoder_block(x, params, n_heads=H, mxu_dtype=jnp.float32))
    assert out_f32.shape == (B, S, D)
    assert jnp.allclose(out_f32, ref, atol=2e-3, rtol=2e-3), "mismatch vs pure-JAX reference"

    print("KERNEL_OK")
</pallas_src>

<mosaic_0001>
module attributes {stable_mosaic.version = 11 : i64} {
  func.func @kv_proj_kernel(%arg0: i32, %arg1: i32, %arg2: memref<1x8x32xf32, #tpu.memory_space<vmem>>, %arg3: memref<32x64xbf16, #tpu.memory_space<vmem>>, %arg4: memref<1x64xf32, #tpu.memory_space<vmem>>, %arg5: memref<1x8x64xbf16, #tpu.memory_space<vmem>>) attributes {dimension_semantics = [#tpu.dimension_semantics<parallel>, #tpu.dimension_semantics<parallel>], iteration_bounds = array<i64: 2, 1>, scalar_prefetch = 0 : i64, scratch_operands = 0 : i64, tpu.core_type = #tpu.core_type<tc>, window_params = [{transform_indices = @transform_0, window_bounds = array<i64: 1, 8, 32>}, {pipeline_mode = #tpu.pipeline_mode<synchronous>, transform_indices = @transform_1, window_bounds = array<i64: 32, 64>}, {pipeline_mode = #tpu.pipeline_mode<synchronous>, transform_indices = @transform_2, window_bounds = array<i64: 1, 64>}, {transform_indices = @transform_3, window_bounds = array<i64: 1, 8, 64>}]} {
    %c0 = arith.constant 0 : index
    %c0_0 = arith.constant 0 : index
    %c0_1 = arith.constant 0 : index
    %0 = vector.load %arg2[%c0, %c0_0, %c0_1] : memref<1x8x32xf32, #tpu.memory_space<vmem>>, vector<1x8x32xf32>
    %1 = vector.shape_cast %0 : vector<1x8x32xf32> to vector<8x32xf32>
    %2 = arith.truncf %1 : vector<8x32xf32> to vector<8x32xbf16>
    %c0_2 = arith.constant 0 : index
    %c0_3 = arith.constant 0 : index
    %3 = vector.load %arg3[%c0_2, %c0_3] : memref<32x64xbf16, #tpu.memory_space<vmem>>, vector<32x64xbf16>
    %cst = arith.constant dense<0.000000e+00> : vector<8x64xf32>
    %4 = tpu.matmul %2, %3, %cst {dimension_numbers = #tpu.dot_dimension_numbers<[1], [0], [0], [1], [0, 0, 1, 1], [], []>} : vector<8x32xbf16>, vector<32x64xbf16>, vector<8x64xf32> -> vector<8x64xf32>
    %c0_4 = arith.constant 0 : index
    %c0_5 = arith.constant 0 : index
    %5 = vector.load %arg4[%c0_4, %c0_5] : memref<1x64xf32, #tpu.memory_space<vmem>>, vector<1x64xf32>
    %6 = vector.broadcast %5 : vector<1x64xf32> to vector<8x64xf32>
    %7 = arith.addf %4, %6 : vector<8x64xf32>
    %8 = arith.truncf %7 : vector<8x64xf32> to vector<8x64xbf16>
    %c0_6 = arith.constant 0 : index
    %c0_7 = arith.constant 0 : index
    %c0_8 = arith.constant 0 : index
    %9 = vector.load %arg5[%c0_6, %c0_7, %c0_8] : memref<1x8x64xbf16, #tpu.memory_space<vmem>>, vector<1x8x64xbf16>
    %10 = vector.shape_cast %9 : vector<1x8x64xbf16> to vector<8x64xbf16>
    %11 = vector.shape_cast %8 : vector<8x64xbf16> to vector<1x8x64xbf16>
    tpu.vector_store %arg5[%c0_6, %c0_7, %c0_8], %11 {strides = array<i32>} : memref<1x8x64xbf16, #tpu.memory_space<vmem>>, vector<1x8x64xbf16>,
    return
  }
  func.func @transform_0(%arg0: i32, %arg1: i32) -> (i32, i32, i32) {
    %c0_i32 = arith.constant 0 : i32
    %c0_i32_0 = arith.constant 0 : i32
    return %arg0, %arg1, %c0_i32 : i32, i32, i32
  }
  func.func @transform_1(%arg0: i32, %arg1: i32) -> (i32, i32) {
    %c0_i32 = arith.constant 0 : i32
    %c0_i32_0 = arith.constant 0 : i32
    %c0_i32_1 = arith.constant 0 : i32
    return %c0_i32, %c0_i32_0 : i32, i32
  }
  func.func @transform_2(%arg0: i32, %arg1: i32) -> (i32, i32) {
    %c0_i32 = arith.constant 0 : i32
    %c0_i32_0 = arith.constant 0 : i32
    %c0_i32_1 = arith.constant 0 : i32
    return %c0_i32, %c0_i32_0 : i32, i32
  }
  func.func @transform_3(%arg0: i32, %arg1: i32) -> (i32, i32, i32) {
    %c0_i32 = arith.constant 0 : i32
    %c0_i32_0 = arith.constant 0 : i32
    return %arg0, %arg1, %c0_i32 : i32, i32, i32
  }
}

</mosaic_0001>

<llo_original>
// kernel: tpu_custom_call.1
$region0: #{tpu_custom_call.1}
  #allocation0 [shape = 'u32[]', space=smem, size = 0x4, offset = 0x4, fixed_abs, tag = 'smem constant byte address 0x4 - core index']
  #allocation1 [shape = 'u32[144,128]{1,0:T(1,128)}', space=vmem, size = 0x12000, scoped, tag = 'internal scratch']
  %s0 = inlined_call_operand.hbm [shape: f32[2,8,32], index: 0, kind: input, shape index: {}]
  %s1 = inlined_call_operand.hbm [shape: bf16[32,64], index: 1, kind: input, shape index: {}]
  %s2 = inlined_call_operand.vmem [shape: f32[1,64], index: 2, kind: input, shape index: {}]
  %s3 = inlined_call_operand.hbm [shape: bf16[2,8,64], index: 3, kind: output, shape index: {}]
  %s4 = sld [smem:[#allocation0]]
  $region53: #{tpu_custom_call.1} parent=0
    _
  %s6 = ssub.s32 1, %s4
  %s7 = scalar_select 0, %s6, %s4
  $region1: #{tpu_custom_call.1} parent=0
    #allocation2 [shape = 'u8[8192]{0}', space=vmem, size = 0x2000, scoped, tag = 'input window, operand 0']
    #allocation3 [shape = 's32[2]{0}', space=sflag, size = 0x8, scoped, tag = 'scoped memory for tpu_custom_call.1']
    #allocation4 [shape = 's32[2]{0}', space=sflag, size = 0x8, scoped, tag = 'scoped memory for tpu_custom_call.1']
    #allocation5 [shape = 'u8[8192]{0}', space=vmem, size = 0x2000, scoped, tag = 'input window, operand 1, single buffered']
    #allocation6 [shape = 's32[1]{0}', space=sflag, size = 0x4, scoped, tag = 'scoped memory for tpu_custom_call.1']
    #allocation7 [shape = 'u8[4096]{0}', space=vmem, size = 0x1000, scoped, tag = 'output window, operand 0']
    %8 = vsyncpa [#allocation3], 0
    %s9 = scalar_lea.sflag [#allocation3], 1
    %10 = vsyncpa %s9, 0
    %11 = vsyncpa [#allocation6], 0
    %12 = vsyncpa [#allocation4], 0
    %s13 = scalar_lea.sflag [#allocation4], 1
    %14 = vsyncpa %s13, 0
    loop: start=0, step=1, limit=4
    $region2: #{tpu_custom_call.1} parent=1 // loop_pre_header
      _
    $region3: #{tpu_custom_call.1} parent=1 // loop_header
      %s16 = sphi 0, %s20
      %p17 = scmp.ge.s32.totalorder %s16, 4
      %s23 = sphi 0, %s35
      %s24 = sphi 0, %s31
      %s25 = sphi 0, %s23
      %s26 = sphi 0, %s24
      %s27 = sphi 0, %s25
      %s28 = sphi 0, %s26
      %s40 = sphi 0, %s42
      %s43 = sphi 0, %s40
      %s44 = sphi 0, %s43
      %s60 = sphi 0, %s44
      %s64 = sphi 0, %s64
      %s66 = sphi 0, %s64
      %s67 = sphi 0, %s66
      %s81 = sphi 0, %s67
      %s85 = sphi 0, %s85
      %s87 = sphi 0, %s85
      %s88 = sphi 0, %s87
      %s102 = sphi 0, %s88
      %s110 = sphi 0, %s112
      %s113 = sphi 0, %s110
      %s114 = sphi 0, %s113
      %s130 = sphi 0, %s114
    $region4: #{tpu_custom_call.1} parent=1 // loop_header_branch
      %19 = sbr.rel (%p17) target = $region8
    $region5: #{tpu_custom_call.1} parent=1 // loop_body
      %s21 = ssub.s32 %s16, 1
      %s22 = ssub.s32 %s16, 2
      %s29 = sadd.s32 1, %s24
      %p30 = scmp.ge.s32.totalorder %s29, 1
      %s31 = scalar_select %p30, 0, %s29
      %s32 = sadd.s32 1, %s23
      %s33 = scalar_select %p30, %s32, %s23
      %p34 = scmp.ge.s32.totalorder %s33, 2
      %s35 = scalar_select %p34, 0, %s33
      %s36 = ssub.s32 %s23, %s35
      %s37 = ssub.s32 %s24, %s31
      %s38 = sor.u32 %s36, %s37
      %p39 = scmp.eq.s32.totalorder %s38, 0
      %s41 = sadd.s32 %s40, 1
      %s42 = scalar_select %p39, %s40, %s41
      %p45 = pneg %p39
      %p46 = scmp.eq.s32.totalorder %s16, 1
      %p47 = por %p45, %p46
      %p48 = scmp.ne.s32.totalorder %s40, %s43
      %p49 = scmp.eq.s32.totalorder %s16, 0
      %p50 = por %p48, %p49
      %p51 = scmp.ne.s32.totalorder %s40, %s43
      %p52 = scmp.eq.s32.totalorder %s21, 1
      %p53 = por %p51, %p52
      %p54 = scmp.ne.s32.totalorder %s43, %s44
      %p55 = scmp.eq.s32.totalorder %s21, 0
      %p56 = por %p54, %p55
      %p57 = scmp.ne.s32.totalorder %s43, %s44
      %p58 = scmp.eq.s32.totalorder %s22, 1
      %p59 = por %p57, %p58
      %p61 = scmp.ne.s32.totalorder %s44, %s60
      %p62 = scmp.eq.s32.totalorder %s22, 0
      %p63 = por %p61, %p62
      %s65 = sadd.s32 %s64, 1
      %p68 = scmp.eq.s32.totalorder %s16, 1
      %p69 = scmp.ne.s32.totalorder %s64, %s66
      %p70 = scmp.eq.s32.totalorder %s16, 0
      %p71 = por %p69, %p70
      %p72 = scmp.ne.s32.totalorder %s64, %s66
      %p73 = scmp.eq.s32.totalorder %s21, 1
      %p74 = por %p72, %p73
      %p75 = scmp.ne.s32.totalorder %s66, %s67
      %p76 = scmp.eq.s32.totalorder %s21, 0
      %p77 = por %p75, %p76
      %p78 = scmp.ne.s32.totalorder %s66, %s67
      %p79 = scmp.eq.s32.totalorder %s22, 1
      %p80 = por %p78, %p79
      %p82 = scmp.ne.s32.totalorder %s67, %s81
      %p83 = scmp.eq.s32.totalorder %s22, 0
      %p84 = por %p82, %p83
      %s86 = sadd.s32 %s85, 1
      %p89 = scmp.eq.s32.totalorder %s16, 1
      %p90 = scmp.ne.s32.totalorder %s85, %s87
      %p91 = scmp.eq.s32.totalorder %s16, 0
      %p92 = por %p90, %p91
      %p93 = scmp.ne.s32.totalorder %s85, %s87
      %p94 = scmp.eq.s32.totalorder %s21, 1
      %p95 = por %p93, %p94
      %p96 = scmp.ne.s32.totalorder %s87, %s88
      %p97 = scmp.eq.s32.totalorder %s21, 0
      %p98 = por %p96, %p97
      %p99 = scmp.ne.s32.totalorder %s87, %s88
      %p100 = scmp.eq.s32.totalorder %s22, 1
      %p101 = por %p99, %p100
      %p103 = scmp.ne.s32.totalorder %s88, %s102
      %p104 = scmp.eq.s32.totalorder %s22, 0
      %p105 = por %p103, %p104
      %s106 = ssub.s32 %s23, %s35
      %s107 = ssub.s32 %s24, %s31
      %s108 = sor.u32 %s106, %s107
      %p109 = scmp.eq.s32.totalorder %s108, 0
      %s111 = sadd.s32 %s110, 1
      %s112 = scalar_select %p109, %s110, %s111
      %p115 = pneg %p109
      %p116 = scmp.eq.s32.totalorder %s16, 1
      %p117 = por %p115, %p116
      %p118 = scmp.ne.s32.totalorder %s110, %s113
      %p119 = scmp.eq.s32.totalorder %s16, 0
      %p120 = por %p118, %p119
      %p121 = scmp.ne.s32.totalorder %s110, %s113
      %p122 = scmp.eq.s32.totalorder %s21, 1
      %p123 = por %p121, %p122
      %p124 = scmp.ne.s32.totalorder %s113, %s114
      %p125 = scmp.eq.s32.totalorder %s21, 0
      %p126 = por %p124, %p125
      %p127 = scmp.ne.s32.totalorder %s113, %s114
      %p128 = scmp.eq.s32.totalorder %s22, 1
      %p129 = por %p127, %p128
      %p131 = scmp.ne.s32.totalorder %s114, %s130
      %p132 = scmp.eq.s32.totalorder %s22, 0
      %p133 = por %p131, %p132
      %p134 = scmp.le.s32.totalorder 1, %s16
      %p135 = scmp.lt.s32.totalorder %s16, 3
      %p136 = pnand %p134, %p135
      %p137 = pneg %p136
      // Predicated region
      $region9: #{tpu_custom_call.1} parent=5 // pred_check
        _
      $region10: #{tpu_custom_call.1} parent=5 // pred_check_branch
        %139 = sbr.rel (%p136) target = $region12
      $region11: #{tpu_custom_call.1} parent=5 // pred_region
        %s140 = ssub.s32 %s16, 1
        // Predicated region
        $region13: #{tpu_custom_call.1} parent=11 // pred_check
          %p141 = pneg %p77
        $region14: #{tpu_custom_call.1} parent=11 // pred_check_branch
          %143 = sbr.rel (%p141) target = $region16
        $region15: #{tpu_custom_call.1} parent=11 // pred_region
          %s145 = ssub.s32 256, 256
          %146 = vsyncadd [#allocation6], %s145
          %s147 = sshll.u32 [#allocation5], 4
          %s148 = int_to_ptr.vmem [resolvable:$true] %s147
          %153 = dma.hbm_to_vmem [thread:$0]  %s1, 256, %s148, [#allocation6], 64, 64, 4
        $region16: #{tpu_custom_call.1} parent=11 // pred_fallthru
          _
        // Predicated region
        $region17: #{tpu_custom_call.1} parent=11 // pred_check
          %p154 = pneg %p98
        $region18: #{tpu_custom_call.1} parent=11 // pred_check_branch
          %156 = sbr.rel (%p154) target = $region20
        $region19: #{tpu_custom_call.1} parent=11 // pred_region
          _
        $region20: #{tpu_custom_call.1} parent=11 // pred_fallthru
          _
      $region12: #{tpu_custom_call.1} parent=5 // pred_fallthru
        _
      %p157 = scmp.lt.s32.totalorder %s16, 2
      // Predicated region
      $region21: #{tpu_custom_call.1} parent=5 // pred_check
        %p158 = pneg %p157
      $region22: #{tpu_custom_call.1} parent=5 // pred_check_branch
        %160 = sbr.rel (%p158) target = $region24
      $region23: #{tpu_custom_call.1} parent=5 // pred_region
        // Predicated region
        $region25: #{tpu_custom_call.1} parent=23 // pred_check
          %p161 = pneg %p50
        $region26: #{tpu_custom_call.1} parent=23 // pred_check_branch
          %163 = sbr.rel (%p161) target = $region28
        $region27: #{tpu_custom_call.1} parent=23 // pred_region
          %s164 = sand.u32 %s40, 1
          %s165 = scalar_lea.sflag [#allocation3], %s164
          %s166 = sand.u32 %s40, 1
          %s167 = smul.addr %s166, 8
          %s168 = scalar_lea.vmem [#allocation2], %s167
          %s170 = ssub.s32 128, 128
          %171 = vsyncadd %s165, %s170
          %s172 = sadd.s32 %s24, %s23
          %s173 = smul.addr %s172, 128
          %s174 = scalar_lea.hbm %s0, %s173
          %s176 = sshll.u32 %s168, 4
          %s177 = int_to_ptr.vmem [resolvable:$true] %s176
          %179 = dma.hbm_to_vmem [thread:$0]  %s174, 128, %s177, %s165
        $region28: #{tpu_custom_call.1} parent=23 // pred_fallthru
          _
      $region24: #{tpu_custom_call.1} parent=5 // pred_fallthru
        _
      %p180 = scmp.le.s32.totalorder 1, %s16
      %p181 = scmp.lt.s32.totalorder %s16, 3
      %p182 = pnand %p180, %p181
      %p183 = pneg %p182
      // Predicated region
      $region29: #{tpu_custom_call.1} parent=5 // pred_check
        _
      $region30: #{tpu_custom_call.1} parent=5 // pred_check_branch
        %185 = sbr.rel (%p182) target = $region32
      $region31: #{tpu_custom_call.1} parent=5 // pred_region
        %s186 = ssub.s32 %s16, 1
        %s187 = sand.u32 %s43, 1
        %s188 = scalar_lea.sflag [#allocation3], %s187
        %s189 = sand.u32 %s43, 1
        %s190 = smul.addr %s189, 8
        %s191 = scalar_lea.vmem [#allocation2], %s190
        // Predicated region
        $region33: #{tpu_custom_call.1} parent=31 // pred_check
          %p192 = pneg %p56
        $region34: #{tpu_custom_call.1} parent=31 // pred_check_branch
          %194 = sbr.rel (%p192) target = $region36
        $region35: #{tpu_custom_call.1} parent=31 // pred_region
          %195 = dma.done %s188, 128
        $region36: #{tpu_custom_call.1} parent=31 // pred_fallthru
          _
        // Predicated region
        $region37: #{tpu_custom_call.1} parent=31 // pred_check
          %p196 = pneg %p77
        $region38: #{tpu_custom_call.1} parent=31 // pred_check_branch
          %198 = sbr.rel (%p196) target = $region40
        $region39: #{tpu_custom_call.1} parent=31 // pred_region
          %199 = dma.done [#allocation6], 256
        $region40: #{tpu_custom_call.1} parent=31 // pred_fallthru
          _
        %s200 = sand.u32 %s43, 1
        %s201 = scalar_lea.sflag [#allocation3], %s200
        %s202 = sand.u32 %s43, 1
        %s203 = smul.addr %s202, 8
        %s204 = scalar_lea.vmem [#allocation2], %s203
        %p205 = pneg %p56
        %p206 = pneg %p53
        %p207 = pneg %p77
        %p208 = pneg %p74
        %p209 = pneg %p98
        %p210 = pneg %p95
        %p211 = pneg %p126
        %p212 = pneg %p123
        %s213 = sand.u32 %s113, 1
        %s214 = scalar_lea.sflag [#allocation4], %s213
        %s215 = sand.u32 %s113, 1
        %s216 = smul.addr %s215, 4
        %s217 = scalar_lea.vmem [#allocation7], %s216
        %v219 = vld [vmem:[%s191] sm:$0xff]
        %v220 = vpack.c.bf16 %v219, %v219
        %v221 = vld [vmem:[#allocation5] sm:$0xf]
        %v222 = vld [vmem:[#allocation5 + $0x4] sm:$0xf]
        %v223 = vld [vmem:[#allocation5 + $0x8] sm:$0xf]
        %v224 = vld [vmem:[#allocation5 + $0xc] sm:$0xf]
        %v225 = vld [vmem:[%s2] sm:$0x1]
        %v227 = vlaneseq
        %v228 = vshrl.u32 %v227, 7
        %v229 = vsub.s32 0, %v228
        %v230 = vrot.slane %v225, %v229
        %v236 = vunpack.c.l.b16 %v221
        %v237 = vunpack.c.l.b16 %v222
        %v238 = vunpack.c.l.b16 %v223
        %v239 = vunpack.c.l.b16 %v224
        %v240 = vpack.c.b16 %v237, %v236
        %v241 = vpack.c.b16 %v239, %v238
        %vm244 = vcmask 261120
        %v246 = vsel %vm244, %v220, 0
        %248 = vmatprep.subr.bf16.mxu0 0
        %249 = vmatpush1.bf16.msra.mxu0 0
        %250 = vmatprep.subr.bf16.mxu0 0
        %251 = vmatpush1.bf16.msra.mxu0 0
        %252 = vmatprep.subr.bf16.mxu0 0
        %253 = vmatpush1.bf16.msra.mxu0 0
        %254 = vmatprep.subr.bf16.mxu0 0
        %255 = vmatpush1.bf16.msra.mxu0 0
        %256 = vmatprep.subr.bf16.mxu0 0
        %257 = vmatpush1.bf16.msra.mxu0 0
        %258 = vmatprep.subr.bf16.mxu0 0
        %259 = vmatpush1.bf16.msra.mxu0 0
        %260 = vmatprep.subr.bf16.mxu0 0
        %261 = vmatpush1.bf16.msra.mxu0 %v241
        %262 = vmatprep.subr.bf16.mxu0 0
        %263 = vmatpush1.bf16.msra.mxu0 %v240
        %264 = vmatprep.subr.bf16.mxu0 0
        %265 = vmatpush2.bf16.msra.mxu0 0
        %266 = vmatprep.subr.bf16.mxu0 0
        %267 = vmatpush2.bf16.msra.mxu0 0
        %268 = vmatprep.subr.bf16.mxu0 0
        %269 = vmatpush2.bf16.msra.mxu0 0
        %270 = vmatprep.subr.bf16.mxu0 0
        %271 = vmatpush2.bf16.msra.mxu0 0
        %272 = vmatprep.subr.bf16.mxu0 0
        %273 = vmatpush2.bf16.msra.mxu0 0
        %274 = vmatprep.subr.bf16.mxu0 0
        %275 = vmatpush2.bf16.msra.mxu0 0
        %276 = vmatprep.subr.bf16.mxu0 0
        %277 = vmatpush2.bf16.msra.mxu0 0
        %278 = vmatprep.subr.bf16.mxu0 0
        %279 = vmatpush2.bf16.msra.mxu0 0
        %280 = vmatprep.mubr.bf16.mxu0 0
        %281 = vmatmul.mubr.bf16.gmra.mxu0 %v246
        %v282 = vpop.f32.mrf.mxu0
        %v283 = vadd.f32 %v230, %v282
        %v284 = vpop.f32.mrf.mxu0
        %v285 = vpop.f32.mrf.mxu0
        %v286 = vpop.f32.mrf.mxu0
        %287 = vdwg.mxu0
        %v288 = vpack.c.bf16 %v283, %v283
        %vm289 = vcmask 519168
        %290 = vst.msk [vmem:[%s217] sm:$0xf] %vm289, %v288
        %s291 = sand.u32 %s113, 1
        %s292 = scalar_lea.sflag [#allocation4], %s291
        %s293 = sand.u32 %s113, 1
        %s294 = smul.addr %s293, 4
        %s295 = scalar_lea.vmem [#allocation7], %s294
        // Predicated region
        $region41: #{tpu_custom_call.1} parent=31 // pred_check
          %p296 = pneg %p123
        $region42: #{tpu_custom_call.1} parent=31 // pred_check_branch
          %298 = sbr.rel (%p296) target = $region44
        $region43: #{tpu_custom_call.1} parent=31 // pred_region
          %s300 = ssub.s32 64, 64
          %301 = vsyncadd %s292, %s300
          %s302 = sadd.s32 %s26, %s25
          %s303 = smul.addr %s302, 64
          %s304 = scalar_lea.hbm %s3, %s303
          %s306 = sshll.u32 %s295, 4
          %s307 = int_to_ptr.vmem [resolvable:$true] %s306
          %309 = dma.vmem_to_hbm [thread:$0]  %s307, 64, %s304, %s292
        $region44: #{tpu_custom_call.1} parent=31 // pred_fallthru
          _
      $region32: #{tpu_custom_call.1} parent=5 // pred_fallthru
        _
      %p310 = scmp.le.s32.totalorder 2, %s16
      // Predicated region
      $region45: #{tpu_custom_call.1} parent=5 // pred_check
        %p311 = pneg %p310
      $region46: #{tpu_custom_call.1} parent=5 // pred_check_branch
        %313 = sbr.rel (%p311) target = $region48
      $region47: #{tpu_custom_call.1} parent=5 // pred_region
        %s314 = ssub.s32 %s16, 2
        // Predicated region
        $region49: #{tpu_custom_call.1} parent=47 // pred_check
          %p315 = pneg %p129
        $region50: #{tpu_custom_call.1} parent=47 // pred_check_branch
          %317 = sbr.rel (%p315) target = $region52
        $region51: #{tpu_custom_call.1} parent=47 // pred_region
          %s318 = sand.u32 %s114, 1
          %s319 = scalar_lea.sflag [#allocation4], %s318
          %s320 = sand.u32 %s114, 1
          %s321 = smul.addr %s320, 4
          %s322 = scalar_lea.vmem [#allocation7], %s321
          %323 = dma.done %s319, 64
        $region52: #{tpu_custom_call.1} parent=47 // pred_fallthru
          _
      $region48: #{tpu_custom_call.1} parent=5 // pred_fallthru
        _
    $region6: #{tpu_custom_call.1} parent=1 // loop_footer
      %s20 = sadd.s32 1, %s16
    $region7: #{tpu_custom_call.1} parent=1 // loop_footer_branch
      %15 = sbr.rel target = $region3
    $region8: #{tpu_custom_call.1} parent=1 // loop_exit
      _
    %324 = vsyncpa [#allocation3], 1
    %s325 = scalar_lea.sflag [#allocation3], 1
    %326 = vsyncpa %s325, 1
    %327 = vsyncpa [#allocation6], 1
    %328 = vsyncpa [#allocation4], 1
    %s329 = scalar_lea.sflag [#allocation4], 1
    %330 = vsyncpa %s329, 1

</llo_original>
